<compile_context>
chip_gen: v7x
topology: tpu7x:2x2x1
jax: 0.10.0
libtpu: 0.0.40
codegen_flags: <defaults>
</compile_context>

<pallas_src>
import jax
import jax.numpy as jnp
from jax.experimental import pallas as pl
from jax.experimental.pallas import tpu as pltpu


LEAKY_SLOPE = 0.01   # PyTorch F.leaky_relu default negative_slope
TM_MAX = 1024        # row-tile cap: ~5 MiB working set in bf16, fits all gens
ROW_ALIGN = 16       # bf16 sublane packing: keep row tiles 16-aligned


def _round_up(x, m):
    return (x + m - 1) // m * m


def _leaky_relu(x):
    return jnp.where(x > 0, x, LEAKY_SLOPE * x)


def qnet_kernel(x_ref, w1_ref, b1_ref, w2_ref, b2_ref, w3_ref, b3_ref, o_ref):
    """Fused MLP on one row tile: leaky_relu(leaky_relu(xW1+b1)W2+b2)W3+b3."""
    x = x_ref[...]                                                    # (TM, K) bf16
    h1 = jnp.dot(x, w1_ref[...], preferred_element_type=jnp.float32) + b1_ref[...]
    h1 = _leaky_relu(h1)                                              # (TM, 32) f32
    h2 = jnp.dot(h1, w2_ref[...], preferred_element_type=jnp.float32) + b2_ref[...]
    h2 = _leaky_relu(h2)                                              # (TM, 32) f32
    out = jnp.dot(h2, w3_ref[...], preferred_element_type=jnp.float32) + b3_ref[...]
    o_ref[...] = out.astype(o_ref.dtype)                              # (TM, 128) bf16, lane-dense


def qnet_forward(obs, kernel_params, action_num, tm_max=TM_MAX):
    """Replicates QNet.forward.

    obs: (B, seq, H, W, C) float32 (or bfloat16) with C*H*W == 1014.
    kernel_params: output of prepare_kernel_params (permute folded into W1,
                   W1 in bf16, action dim padded to 128 lanes).
    Returns: (B, seq, action_num) float32.
    """
    B, S, H, W, C = obs.shape
    N = B * S
    K = H * W * C

    # NHWC->NCHW permute is folded into W1 -> flatten directly (no HBM transpose).
    # Cast the activation stream to bf16 (ideally the producer already emits bf16).
    x = obs.reshape(N, K)
    if x.dtype != jnp.bfloat16:
        x = x.astype(jnp.bfloat16)

    w1t, b1, w2t, b2, w3t, b3 = kernel_params
    HID = w1t.shape[1]
    A_pad = w3t.shape[1]

    # Row tile: >=2 grid steps when N allows (feeds both v7x TensorCores),
    # 16-aligned for bf16 sublane packing, never larger than needed.
    TM = max(ROW_ALIGN,
             min(tm_max,
                 _round_up(pl.cdiv(N, 2), ROW_ALIGN),
                 _round_up(N, ROW_ALIGN)))
    grid = (pl.cdiv(N, TM),)   # partial last block is masked by Pallas (no jnp.pad)

    def const_spec(shape):
        return pl.BlockSpec(shape, lambda i: (0, 0))

    flops = 2 * N * (K * HID + HID * HID + HID * A_pad)
    bytes_accessed = (2 * N * K            # bf16 x read
                      + 2 * N * A_pad      # bf16 out write
                      + 2 * K * HID        # bf16 W1
                      + 4 * (HID * HID + HID * A_pad + 2 * HID + A_pad))

    out = pl.pallas_call(
        qnet_kernel,
        out_shape=jax.ShapeDtypeStruct((N, A_pad), jnp.bfloat16),
        grid_spec=pltpu.PrefetchScalarGridSpec(
            num_scalar_prefetch=0,
            grid=grid,
            in_specs=[
                pl.BlockSpec((TM, K), lambda i: (i, 0)),   # x row tile (pipelined)
                const_spec((K, HID)),                      # W1 bf16 (resident)
                const_spec((1, HID)),                      # b1
                const_spec((HID, HID)),                    # W2
                const_spec((1, HID)),                      # b2
                const_spec((HID, A_pad)),                  # W3 (padded cols)
                const_spec((1, A_pad)),                    # b3 (padded)
            ],
            out_specs=pl.BlockSpec((TM, A_pad), lambda i: (i, 0)),
        ),
        compiler_params=pltpu.CompilerParams(
            dimension_semantics=("parallel",),             # shard rows across TCs (v7x)
        ),
        cost_estimate=pl.CostEstimate(
            flops=flops, transcendentals=0, bytes_accessed=bytes_accessed),
    )(x, w1t, b1, w2t, b2, w3t, b3)

    # Slice real action columns, return f32 like the PyTorch module.
    return out[:, :action_num].astype(jnp.float32).reshape(B, S, action_num)


def init_params(key, action_num, in_features=169 * 6, hidden=32):
    """PyTorch-layout parameters (Linear weight is (out, in)).

    Weights ~ N(0, 0.1) per the module; biases use the default Linear init
    U(-1/sqrt(in), 1/sqrt(in)).
    """
    k = jax.random.split(key, 6)
    w1 = 0.1 * jax.random.normal(k[0], (hidden, in_features), jnp.float32)
    b1 = jax.random.uniform(k[1], (hidden,), jnp.float32,
                            -1.0 / jnp.sqrt(in_features), 1.0 / jnp.sqrt(in_features))
    w2 = 0.1 * jax.random.normal(k[2], (hidden, hidden), jnp.float32)
    b2 = jax.random.uniform(k[3], (hidden,), jnp.float32,
                            -1.0 / jnp.sqrt(hidden), 1.0 / jnp.sqrt(hidden))
    w3 = 0.1 * jax.random.normal(k[4], (action_num, hidden), jnp.float32)
    b3 = jax.random.uniform(k[5], (action_num,), jnp.float32,
                            -1.0 / jnp.sqrt(hidden), 1.0 / jnp.sqrt(hidden))
    return (w1, b1, w2, b2, w3, b3)


def prepare_kernel_params(torch_params, H, W, C):
    """One-time transform of PyTorch-layout params into kernel layout.

    * Folds the (B,S,H,W,C)->(B,S,C,H,W) permute into W1's input rows so the
      kernel can consume a direct (N, H*W*C) flatten of obs.
    * Transposes weights to (in, out) so the kernel does x @ Wt; W1 in bf16.
    * Zero-pads the action dim of W3/b3 to a multiple of 128 for lane-dense
      (unmasked) output stores.
    """
    w1, b1, w2, b2, w3, b3 = torch_params
    hidden = w1.shape[0]
    A = w3.shape[0]

    # W1_folded[o, h*W*C + w*C + c] == W1[o, c*H*W + h*W + w]
    w1_folded = w1.reshape(hidden, C, H, W).transpose(0, 2, 3, 1).reshape(hidden, H * W * C)
    w1t = w1_folded.T.astype(jnp.bfloat16)             # (1014, 32) bf16
    w2t = w2.T                                          # (32, 32)  f32

    a_pad = max(_round_up(A, 128), 128)
    w3t = jnp.zeros((hidden, a_pad), jnp.float32).at[:, :A].set(w3.T)
    b3p = jnp.zeros((1, a_pad), jnp.float32).at[:, :A].set(b3.reshape(1, A))

    return (w1t, b1.reshape(1, hidden), w2t, b2.reshape(1, hidden), w3t, b3p)


if __name__ == "__main__":
    key = jax.random.PRNGKey(0)
    k_obs, k_par = jax.random.split(key)

    B, S, H, W, C = 2, 8, 13, 13, 6      # C*H*W = 1014 = 169*6, matches fc1
    action_num = 8

    obs = jax.random.normal(k_obs, (B, S, H, W, C), jnp.float32)
    torch_params = init_params(k_par, action_num)
    kernel_params = prepare_kernel_params(torch_params, H, W, C)

    fwd = jax.jit(lambda o, p: qnet_forward(o, p, action_num))
    q = jax.block_until_ready(fwd(obs, kernel_params))

    # Pure-JAX f32 reference following the PyTorch module exactly (permute +
    # flatten + torch-layout weights) — guards the permute-fold and padding.
    w1, b1, w2, b2, w3, b3 = torch_params
    x_ref = jnp.transpose(obs, (0, 1, 4, 2, 3)).reshape(B * S, C * H * W)
    h1 = jax.nn.leaky_relu(x_ref @ w1.T + b1, LEAKY_SLOPE)
    h2 = jax.nn.leaky_relu(h1 @ w2.T + b2, LEAKY_SLOPE)
    ref = (h2 @ w3.T + b3).reshape(B, S, action_num)

    assert q.shape == (B, S, action_num) and q.dtype == jnp.float32
    # bf16 x/W1 stream + bf16 output store -> loosened parity tolerance vs f32.
    err = float(jnp.max(jnp.abs(q - ref)))
    assert jnp.allclose(q, ref, atol=5e-2, rtol=5e-2), err

    print("KERNEL_OK")
</pallas_src>

<mosaic_0001>
module attributes {stable_mosaic.version = 11 : i64} {
  func.func @qnet_kernel(%arg0: i32, %arg1: memref<16x1014xbf16, #tpu.memory_space<vmem>>, %arg2: memref<1014x32xbf16, #tpu.memory_space<vmem>>, %arg3: memref<1x32xf32, #tpu.memory_space<vmem>>, %arg4: memref<32x32xf32, #tpu.memory_space<vmem>>, %arg5: memref<1x32xf32, #tpu.memory_space<vmem>>, %arg6: memref<32x128xf32, #tpu.memory_space<vmem>>, %arg7: memref<1x128xf32, #tpu.memory_space<vmem>>, %arg8: memref<16x128xbf16, #tpu.memory_space<vmem>>) attributes {dimension_semantics = [#tpu.dimension_semantics<parallel>], iteration_bounds = array<i64: 1>, scalar_prefetch = 0 : i64, scratch_operands = 0 : i64, tpu.core_type = #tpu.core_type<tc>, window_params = [{transform_indices = @transform_0, window_bounds = array<i64: 16, 1014>}, {pipeline_mode = #tpu.pipeline_mode<synchronous>, transform_indices = @transform_1, window_bounds = array<i64: 1014, 32>}, {pipeline_mode = #tpu.pipeline_mode<synchronous>, transform_indices = @transform_2, window_bounds = array<i64: 1, 32>}, {pipeline_mode = #tpu.pipeline_mode<synchronous>, transform_indices = @transform_3, window_bounds = array<i64: 32, 32>}, {pipeline_mode = #tpu.pipeline_mode<synchronous>, transform_indices = @transform_4, window_bounds = array<i64: 1, 32>}, {pipeline_mode = #tpu.pipeline_mode<synchronous>, transform_indices = @transform_5, window_bounds = array<i64: 32, 128>}, {pipeline_mode = #tpu.pipeline_mode<synchronous>, transform_indices = @transform_6, window_bounds = array<i64: 1, 128>}, {transform_indices = @transform_7, window_bounds = array<i64: 16, 128>}]} {
    %c0 = arith.constant 0 : index
    %c0_0 = arith.constant 0 : index
    %0 = vector.load %arg1[%c0, %c0_0] : memref<16x1014xbf16, #tpu.memory_space<vmem>>, vector<16x1014xbf16>
    %c0_1 = arith.constant 0 : index
    %c0_2 = arith.constant 0 : index
    %1 = vector.load %arg2[%c0_1, %c0_2] : memref<1014x32xbf16, #tpu.memory_space<vmem>>, vector<1014x32xbf16>
    %cst = arith.constant dense<0.000000e+00> : vector<16x32xf32>
    %2 = tpu.matmul %0, %1, %cst {dimension_numbers = #tpu.dot_dimension_numbers<[1], [0], [0], [1], [0, 0, 1, 1], [], []>} : vector<16x1014xbf16>, vector<1014x32xbf16>, vector<16x32xf32> -> vector<16x32xf32>
    %c0_3 = arith.constant 0 : index
    %c0_4 = arith.constant 0 : index
    %3 = vector.load %arg3[%c0_3, %c0_4] : memref<1x32xf32, #tpu.memory_space<vmem>>, vector<1x32xf32>
    %4 = vector.broadcast %3 : vector<1x32xf32> to vector<16x32xf32>
    %5 = arith.addf %2, %4 : vector<16x32xf32>
    %cst_5 = arith.constant 0.000000e+00 : f32
    %6 = vector.broadcast %cst_5 : f32 to vector<16x32xf32>
    %7 = arith.cmpf ogt, %5, %6 : vector<16x32xf32>
    %cst_6 = arith.constant 0.00999999977 : f32
    %8 = vector.broadcast %cst_6 : f32 to vector<16x32xf32>
    %9 = arith.mulf %8, %5 : vector<16x32xf32>
    %10 = arith.select %7, %5, %9 : vector<16x32xi1>, vector<16x32xf32>
    %c0_7 = arith.constant 0 : index
    %c0_8 = arith.constant 0 : index
    %11 = vector.load %arg4[%c0_7, %c0_8] : memref<32x32xf32, #tpu.memory_space<vmem>>, vector<32x32xf32>
    %cst_9 = arith.constant dense<0.000000e+00> : vector<16x32xf32>
    %12 = tpu.matmul %10, %11, %cst_9 {dimension_numbers = #tpu.dot_dimension_numbers<[1], [0], [0], [1], [0, 0, 1, 1], [], []>} : vector<16x32xf32>, vector<32x32xf32>, vector<16x32xf32> -> vector<16x32xf32>
    %c0_10 = arith.constant 0 : index
    %c0_11 = arith.constant 0 : index
    %13 = vector.load %arg5[%c0_10, %c0_11] : memref<1x32xf32, #tpu.memory_space<vmem>>, vector<1x32xf32>
    %14 = vector.broadcast %13 : vector<1x32xf32> to vector<16x32xf32>
    %15 = arith.addf %12, %14 : vector<16x32xf32>
    %cst_12 = arith.constant 0.000000e+00 : f32
    %16 = vector.broadcast %cst_12 : f32 to vector<16x32xf32>
    %17 = arith.cmpf ogt, %15, %16 : vector<16x32xf32>
    %cst_13 = arith.constant 0.00999999977 : f32
    %18 = vector.broadcast %cst_13 : f32 to vector<16x32xf32>
    %19 = arith.mulf %18, %15 : vector<16x32xf32>
    %20 = arith.select %17, %15, %19 : vector<16x32xi1>, vector<16x32xf32>
    %c0_14 = arith.constant 0 : index
    %c0_15 = arith.constant 0 : index
    %21 = vector.load %arg6[%c0_14, %c0_15] : memref<32x128xf32, #tpu.memory_space<vmem>>, vector<32x128xf32>
    %cst_16 = arith.constant dense<0.000000e+00> : vector<16x128xf32>
    %22 = tpu.matmul %20, %21, %cst_16 {dimension_numbers = #tpu.dot_dimension_numbers<[1], [0], [0], [1], [0, 0, 1, 1], [], []>} : vector<16x32xf32>, vector<32x128xf32>, vector<16x128xf32> -> vector<16x128xf32>
    %c0_17 = arith.constant 0 : index
    %c0_18 = arith.constant 0 : index
    %23 = vector.load %arg7[%c0_17, %c0_18] : memref<1x128xf32, #tpu.memory_space<vmem>>, vector<1x128xf32>
    %24 = vector.broadcast %23 : vector<1x128xf32> to vector<16x128xf32>
    %25 = arith.addf %22, %24 : vector<16x128xf32>
    %26 = arith.truncf %25 : vector<16x128xf32> to vector<16x128xbf16>
    %c0_19 = arith.constant 0 : index
    %c0_20 = arith.constant 0 : index
    %27 = vector.load %arg8[%c0_19, %c0_20] : memref<16x128xbf16, #tpu.memory_space<vmem>>, vector<16x128xbf16>
    tpu.vector_store %arg8[%c0_19, %c0_20], %26 {strides = array<i32>} : memref<16x128xbf16, #tpu.memory_space<vmem>>, vector<16x128xbf16>,
    return
  }
  func.func @transform_0(%arg0: i32) -> (i32, i32) {
    %c0_i32 = arith.constant 0 : i32
    %c0_i32_0 = arith.constant 0 : i32
    return %arg0, %c0_i32 : i32, i32
  }
  func.func @transform_1(%arg0: i32) -> (i32, i32) {
    %c0_i32 = arith.constant 0 : i32
    %c0_i32_0 = arith.constant 0 : i32
    %c0_i32_1 = arith.constant 0 : i32
    return %c0_i32, %c0_i32_0 : i32, i32
  }
  func.func @transform_2(%arg0: i32) -> (i32, i32) {
    %c0_i32 = arith.constant 0 : i32
    %c0_i32_0 = arith.constant 0 : i32
    %c0_i32_1 = arith.constant 0 : i32
    return %c0_i32, %c0_i32_0 : i32, i32
  }
  func.func @transform_3(%arg0: i32) -> (i32, i32) {
    %c0_i32 = arith.constant 0 : i32
    %c0_i32_0 = arith.constant 0 : i32
    %c0_i32_1 = arith.constant 0 : i32
    return %c0_i32, %c0_i32_0 : i32, i32
  }
  func.func @transform_4(%arg0: i32) -> (i32, i32) {
    %c0_i32 = arith.constant 0 : i32
    %c0_i32_0 = arith.constant 0 : i32
    %c0_i32_1 = arith.constant 0 : i32
    return %c0_i32, %c0_i32_0 : i32, i32
  }
  func.func @transform_5(%arg0: i32) -> (i32, i32) {
    %c0_i32 = arith.constant 0 : i32
    %c0_i32_0 = arith.constant 0 : i32
    %c0_i32_1 = arith.constant 0 : i32
    return %c0_i32, %c0_i32_0 : i32, i32
  }
  func.func @transform_6(%arg0: i32) -> (i32, i32) {
    %c0_i32 = arith.constant 0 : i32
    %c0_i32_0 = arith.constant 0 : i32
    %c0_i32_1 = arith.constant 0 : i32
    return %c0_i32, %c0_i32_0 : i32, i32
  }
  func.func @transform_7(%arg0: i32) -> (i32, i32) {
    %c0_i32 = arith.constant 0 : i32
    %c0_i32_0 = arith.constant 0 : i32
    return %arg0, %c0_i32 : i32, i32
  }
}

</mosaic_0001>

<llo_original>
// kernel: _lambda_.1
$region0: #{_lambda_.1}
  #allocation0 [shape = 'u32[]', space=smem, size = 0x4, offset = 0x4, fixed_abs, tag = 'smem constant byte address 0x4 - core index']
  #allocation1 [shape = 'u32[144,128]{1,0:T(1,128)}', space=vmem, size = 0x12000, scoped, tag = 'internal scratch']
  %s0 = inlined_call_operand.vmem [shape: bf16[16,1014], index: 0, kind: input, shape index: {}]
  %s1 = inlined_call_operand.vmem [shape: bf16[1014,32], index: 1, kind: input, shape index: {}]
  %s2 = inlined_call_operand.vmem [shape: f32[1,32], index: 2, kind: input, shape index: {}]
  %s3 = inlined_call_operand.vmem [shape: f32[32,32], index: 3, kind: input, shape index: {}]
  %s4 = inlined_call_operand.vmem [shape: f32[1,32], index: 4, kind: input, shape index: {}]
  %s5 = inlined_call_operand.vmem [shape: f32[32,128], index: 5, kind: input, shape index: {}]
  %s6 = inlined_call_operand.vmem [shape: f32[1,128], index: 6, kind: input, shape index: {}]
  %s7 = inlined_call_operand.vmem [shape: bf16[16,128], index: 7, kind: output, shape index: {}]
  %s8 = sld [smem:[#allocation0]]
  $region38: #{_lambda_.1} parent=0
    _
  %s10 = ssub.s32 1, %s8
  %s11 = scalar_select 0, %s10, %s8
  // Predicated region
  $region2: #{_lambda_.1} parent=0 // pred_check
    _
  $region3: #{_lambda_.1} parent=0 // pred_check_branch
    %13 = sbr.rel (0) target = $region5
  $region4: #{_lambda_.1} parent=0 // pred_region
    _
  $region5: #{_lambda_.1} parent=0 // pred_fallthru
    _
  // Predicated region
  $region6: #{_lambda_.1} parent=0 // pred_check
    _
  $region7: #{_lambda_.1} parent=0 // pred_check_branch
    %15 = sbr.rel (0) target = $region9
  $region8: #{_lambda_.1} parent=0 // pred_region
    _
  $region9: #{_lambda_.1} parent=0 // pred_fallthru
    _
  // Predicated region
  $region10: #{_lambda_.1} parent=0 // pred_check
    _
  $region11: #{_lambda_.1} parent=0 // pred_check_branch
    %17 = sbr.rel (0) target = $region13
  $region12: #{_lambda_.1} parent=0 // pred_region
    _
  $region13: #{_lambda_.1} parent=0 // pred_fallthru
    _
  // Predicated region
  $region14: #{_lambda_.1} parent=0 // pred_check
    _
  $region15: #{_lambda_.1} parent=0 // pred_check_branch
    %19 = sbr.rel (0) target = $region17
  $region16: #{_lambda_.1} parent=0 // pred_region
    _
  $region17: #{_lambda_.1} parent=0 // pred_fallthru
    _
  // Predicated region
  $region18: #{_lambda_.1} parent=0 // pred_check
    _
  $region19: #{_lambda_.1} parent=0 // pred_check_branch
    %21 = sbr.rel (0) target = $region21
  $region20: #{_lambda_.1} parent=0 // pred_region
    _
  $region21: #{_lambda_.1} parent=0 // pred_fallthru
    _
  // Predicated region
  $region22: #{_lambda_.1} parent=0 // pred_check
    _
  $region23: #{_lambda_.1} parent=0 // pred_check_branch
    %23 = sbr.rel (0) target = $region25
  $region24: #{_lambda_.1} parent=0 // pred_region
    _
  $region25: #{_lambda_.1} parent=0 // pred_fallthru
    _
  // Predicated region
  $region26: #{_lambda_.1} parent=0 // pred_check
    _
  $region27: #{_lambda_.1} parent=0 // pred_check_branch
    %25 = sbr.rel (0) target = $region29
  $region28: #{_lambda_.1} parent=0 // pred_region
    _
  $region29: #{_lambda_.1} parent=0 // pred_fallthru
    _
  %v27 = vld [vmem:[%s0] sm:$0xff]
  %v28 = vld [vmem:[%s0 + $0x8] sm:$0xff]
  %v29 = vld [vmem:[%s0 + $0x10] sm:$0xff]
  %v30 = vld [vmem:[%s0 + $0x18] sm:$0xff]
  %v31 = vld [vmem:[%s0 + $0x20] sm:$0xff]
  %v32 = vld [vmem:[%s0 + $0x28] sm:$0xff]
  %v33 = vld [vmem:[%s0 + $0x30] sm:$0xff]
  %v34 = vld [vmem:[%s0 + $0x38] sm:$0xff]
  %v35 = vld [vmem:[%s1] sm:$0xf]
  %v36 = vld [vmem:[%s1 + $0x4] sm:$0xf]
  %v37 = vld [vmem:[%s1 + $0x8] sm:$0xf]
  %v38 = vld [vmem:[%s1 + $0xc] sm:$0xf]
  %v39 = vld [vmem:[%s1 + $0x10] sm:$0xf]
  %v40 = vld [vmem:[%s1 + $0x14] sm:$0xf]
  %v41 = vld [vmem:[%s1 + $0x18] sm:$0xf]
  %v42 = vld [vmem:[%s1 + $0x1c] sm:$0xf]
  %v43 = vld [vmem:[%s1 + $0x20] sm:$0xf]
  %v44 = vld [vmem:[%s1 + $0x24] sm:$0xf]
  %v45 = vld [vmem:[%s1 + $0x28] sm:$0xf]
  %v46 = vld [vmem:[%s1 + $0x2c] sm:$0xf]
  %v47 = vld [vmem:[%s1 + $0x30] sm:$0xf]
  %v48 = vld [vmem:[%s1 + $0x34] sm:$0xf]
  %v49 = vld [vmem:[%s1 + $0x38] sm:$0xf]
  %v50 = vld [vmem:[%s1 + $0x3c] sm:$0xf]
  %v51 = vld [vmem:[%s1 + $0x40] sm:$0xf]
  %v52 = vld [vmem:[%s1 + $0x44] sm:$0xf]
  %v53 = vld [vmem:[%s1 + $0x48] sm:$0xf]
  %v54 = vld [vmem:[%s1 + $0x4c] sm:$0xf]
  %v55 = vld [vmem:[%s1 + $0x50] sm:$0xf]
  %v56 = vld [vmem:[%s1 + $0x54] sm:$0xf]
  %v57 = vld [vmem:[%s1 + $0x58] sm:$0xf]
  %v58 = vld [vmem:[%s1 + $0x5c] sm:$0xf]
  %v59 = vld [vmem:[%s1 + $0x60] sm:$0xf]
  %v60 = vld [vmem:[%s1 + $0x64] sm:$0xf]
  %v61 = vld [vmem:[%s1 + $0x68] sm:$0xf]
  %v62 = vld [vmem:[%s1 + $0x6c] sm:$0xf]
  %v63 = vld [vmem:[%s1 + $0x70] sm:$0xf]
  %v64 = vld [vmem:[%s1 + $0x74] sm:$0xf]
  %v65 = vld [vmem:[%s1 + $0x78] sm:$0xf]
  %v66 = vld [vmem:[%s1 + $0x7c] sm:$0xf]
  %v67 = vld [vmem:[%s1 + $0x80] sm:$0xf]
  %v68 = vld [vmem:[%s1 + $0x84] sm:$0xf]
  %v69 = vld [vmem:[%s1 + $0x88] sm:$0xf]
  %v70 = vld [vmem:[%s1 + $0x8c] sm:$0xf]
  %v71 = vld [vmem:[%s1 + $0x90] sm:$0xf]
  %v72 = vld [vmem:[%s1 + $0x94] sm:$0xf]
  %v73 = vld [vmem:[%s1 + $0x98] sm:$0xf]
  %v74 = vld [vmem:[%s1 + $0x9c] sm:$0xf]
  %v75 = vld [vmem:[%s1 + $0xa0] sm:$0xf]
  %v76 = vld [vmem:[%s1 + $0xa4] sm:$0xf]
  %v77 = vld [vmem:[%s1 + $0xa8] sm:$0xf]
  %v78 = vld [vmem:[%s1 + $0xac] sm:$0xf]
  %v79 = vld [vmem:[%s1 + $0xb0] sm:$0xf]
  %v80 = vld [vmem:[%s1 + $0xb4] sm:$0xf]
  %v81 = vld [vmem:[%s1 + $0xb8] sm:$0xf]
  %v82 = vld [vmem:[%s1 + $0xbc] sm:$0xf]
  %v83 = vld [vmem:[%s1 + $0xc0] sm:$0xf]
  %v84 = vld [vmem:[%s1 + $0xc4] sm:$0xf]
  %v85 = vld [vmem:[%s1 + $0xc8] sm:$0xf]
  %v86 = vld [vmem:[%s1 + $0xcc] sm:$0xf]
  %v87 = vld [vmem:[%s1 + $0xd0] sm:$0xf]
  %v88 = vld [vmem:[%s1 + $0xd4] sm:$0xf]
  %v89 = vld [vmem:[%s1 + $0xd8] sm:$0xf]
  %v90 = vld [vmem:[%s1 + $0xdc] sm:$0xf]
  %v91 = vld [vmem:[%s1 + $0xe0] sm:$0xf]
  %v92 = vld [vmem:[%s1 + $0xe4] sm:$0xf]
  %v93 = vld [vmem:[%s1 + $0xe8] sm:$0xf]
  %v94 = vld [vmem:[%s1 + $0xec] sm:$0xf]
  %v95 = vld [vmem:[%s1 + $0xf0] sm:$0xf]
  %v96 = vld [vmem:[%s1 + $0xf4] sm:$0xf]
  %v97 = vld [vmem:[%s1 + $0xf8] sm:$0xf]
  %v98 = vld [vmem:[%s1 + $0xfc] sm:$0xf]
  %v99 = vld [vmem:[%s1 + $0x100] sm:$0xf]
  %v100 = vld [vmem:[%s1 + $0x104] sm:$0xf]
  %v101 = vld [vmem:[%s1 + $0x108] sm:$0xf]
  %v102 = vld [vmem:[%s1 + $0x10c] sm:$0xf]
  %v103 = vld [vmem:[%s1 + $0x110] sm:$0xf]
  %v104 = vld [vmem:[%s1 + $0x114] sm:$0xf]
  %v105 = vld [vmem:[%s1 + $0x118] sm:$0xf]
  %v106 = vld [vmem:[%s1 + $0x11c] sm:$0xf]
  %v107 = vld [vmem:[%s1 + $0x120] sm:$0xf]
  %v108 = vld [vmem:[%s1 + $0x124] sm:$0xf]
  %v109 = vld [vmem:[%s1 + $0x128] sm:$0xf]
  %v110 = vld [vmem:[%s1 + $0x12c] sm:$0xf]
  %v111 = vld [vmem:[%s1 + $0x130] sm:$0xf]
  %v112 = vld [vmem:[%s1 + $0x134] sm:$0xf]
  %v113 = vld [vmem:[%s1 + $0x138] sm:$0xf]
  %v114 = vld [vmem:[%s1 + $0x13c] sm:$0xf]
  %v115 = vld [vmem:[%s1 + $0x140] sm:$0xf]
  %v116 = vld [vmem:[%s1 + $0x144] sm:$0xf]
  %v117 = vld [vmem:[%s1 + $0x148] sm:$0xf]
  %v118 = vld [vmem:[%s1 + $0x14c] sm:$0xf]
  %v119 = vld [vmem:[%s1 + $0x150] sm:$0xf]
  %v120 = vld [vmem:[%s1 + $0x154] sm:$0xf]
  %v121 = vld [vmem:[%s1 + $0x158] sm:$0xf]
  %v122 = vld [vmem:[%s1 + $0x15c] sm:$0xf]
  %v123 = vld [vmem:[%s1 + $0x160] sm:$0xf]
  %v124 = vld [vmem:[%s1 + $0x164] sm:$0xf]
  %v125 = vld [vmem:[%s1 + $0x168] sm:$0xf]
  %v126 = vld [vmem:[%s1 + $0x16c] sm:$0xf]
  %v127 = vld [vmem:[%s1 + $0x170] sm:$0xf]
  %v128 = vld [vmem:[%s1 + $0x174] sm:$0xf]
  %v129 = vld [vmem:[%s1 + $0x178] sm:$0xf]
  %v130 = vld [vmem:[%s1 + $0x17c] sm:$0xf]
  %v131 = vld [vmem:[%s1 + $0x180] sm:$0xf]
  %v132 = vld [vmem:[%s1 + $0x184] sm:$0xf]
  %v133 = vld [vmem:[%s1 + $0x188] sm:$0xf]
  %v134 = vld [vmem:[%s1 + $0x18c] sm:$0xf]
  %v135 = vld [vmem:[%s1 + $0x190] sm:$0xf]
  %v136 = vld [vmem:[%s1 + $0x194] sm:$0xf]
  %v137 = vld [vmem:[%s1 + $0x198] sm:$0xf]
  %v138 = vld [vmem:[%s1 + $0x19c] sm:$0xf]
  %v139 = vld [vmem:[%s1 + $0x1a0] sm:$0xf]
  %v140 = vld [vmem:[%s1 + $0x1a4] sm:$0xf]
  %v141 = vld [vmem:[%s1 + $0x1a8] sm:$0xf]
  %v142 = vld [vmem:[%s1 + $0x1ac] sm:$0xf]
  %v143 = vld [vmem:[%s1 + $0x1b0] sm:$0xf]
  %v144 = vld [vmem:[%s1 + $0x1b4] sm:$0xf]
  %v145 = vld [vmem:[%s1 + $0x1b8] sm:$0xf]
  %v146 = vld [vmem:[%s1 + $0x1bc] sm:$0xf]
  %v147 = vld [vmem:[%s1 + $0x1c0] sm:$0xf]
  %v148 = vld [vmem:[%s1 + $0x1c4] sm:$0xf]
  %v149 = vld [vmem:[%s1 + $0x1c8] sm:$0xf]
  %v150 = vld [vmem:[%s1 + $0x1cc] sm:$0xf]
  %v151 = vld [vmem:[%s1 + $0x1d0] sm:$0xf]
  %v152 = vld [vmem:[%s1 + $0x1d4] sm:$0xf]
  %v153 = vld [vmem:[%s1 + $0x1d8] sm:$0xf]
  %v154 = vld [vmem:[%s1 + $0x1dc] sm:$0xf]
  %v155 = vld [vmem:[%s1 + $0x1e0] sm:$0xf]
  %v156 = vld [vmem:[%s1 + $0x1e4] sm:$0xf]
  %v157 = vld [vmem:[%s1 + $0x1e8] sm:$0xf]
  %v158 = vld [vmem:[%s1 + $0x1ec] sm:$0xf]
  %v159 = vld [vmem:[%s1 + $0x1f0] sm:$0xf]
  %v160 = vld [vmem:[%s1 + $0x1f4] sm:$0xf]
  %v161 = vld [vmem:[%s1 + $0x1f8] sm:$0x7]
  %v162 = vld [vmem:[%s2] sm:$0x1]
  %v164 = vlaneseq
  %v165 = vshrl.u32 %v164, 7
  %v166 = vsub.s32 0, %v165
  %v167 = vrot.slane %v162, %v166
  %v177 = vunpack.c.l.b16 %v27
  %v178 = vunpack.c.h.b16 %v27
  %v179 = vunpack.c.l.b16 %v28
  %v180 = vunpack.c.h.b16 %v28
  %v181 = vunpack.c.l.b16 %v29
  %v182 = vunpack.c.h.b16 %v29
  %v183 = vunpack.c.l.b16 %v30
  %v184 = vunpack.c.h.b16 %v30
  %v185 = vunpack.c.l.b16 %v31
  %v186 = vunpack.c.h.b16 %v31
  %v187 = vunpack.c.l.b16 %v32
  %v188 = vunpack.c.h.b16 %v32
  %v189 = vunpack.c.l.b16 %v33
  %v190 = vunpack.c.h.b16 %v33
  %v191 = vunpack.c.l.b16 %v34
  %v192 = vunpack.c.h.b16 %v34
  %v193 = vpack.c.b16 %v185, %v177
  %v194 = vpack.c.b16 %v186, %v178
  %v195 = vpack.c.b16 %v187, %v179
  %v196 = vpack.c.b16 %v188, %v180
  %v197 = vpack.c.b16 %v189, %v181
  %v198 = vpack.c.b16 %v190, %v182
  %v199 = vpack.c.b16 %v191, %v183
  %v200 = vpack.c.b16 %v192, %v184
  %v335 = vunpack.c.l.b16 %v35
  %v336 = vunpack.c.l.b16 %v36
  %v337 = vunpack.c.l.b16 %v37
  %v338 = vunpack.c.l.b16 %v38
  %v339 = vunpack.c.l.b16 %v39
  %v340 = vunpack.c.l.b16 %v40
  %v341 = vunpack.c.l.b16 %v41
  %v342 = vunpack.c.l.b16 %v42
  %v343 = vunpack.c.l.b16 %v43
  %v344 = vunpack.c.l.b16 %v44
  %v345 = vunpack.c.l.b16 %v45
  %v346 = vunpack.c.l.b16 %v46
  %v347 = vunpack.c.l.b16 %v47
  %v348 = vunpack.c.l.b16 %v48
  %v349 = vunpack.c.l.b16 %v49
  %v350 = vunpack.c.l.b16 %v50
  %v351 = vunpack.c.l.b16 %v51
  %v352 = vunpack.c.l.b16 %v52
  %v353 = vunpack.c.l.b16 %v53
  %v354 = vunpack.c.l.b16 %v54
  %v355 = vunpack.c.l.b16 %v55
  %v356 = vunpack.c.l.b16 %v56
  %v357 = vunpack.c.l.b16 %v57
  %v358 = vunpack.c.l.b16 %v58
  %v359 = vunpack.c.l.b16 %v59
  %v360 = vunpack.c.l.b16 %v60
  %v361 = vunpack.c.l.b16 %v61
  %v362 = vunpack.c.l.b16 %v62
  %v363 = vunpack.c.l.b16 %v63
  %v364 = vunpack.c.l.b16 %v64
  %v365 = vunpack.c.l.b16 %v65
  %v366 = vunpack.c.l.b16 %v66
  %v367 = vunpack.c.l.b16 %v67
  %v368 = vunpack.c.l.b16 %v68
  %v369 = vunpack.c.l.b16 %v69
  %v370 = vunpack.c.l.b16 %v70
  %v371 = vunpack.c.l.b16 %v71
  %v372 = vunpack.c.l.b16 %v72
  %v373 = vunpack.c.l.b16 %v73
  %v374 = vunpack.c.l.b16 %v74
  %v375 = vunpack.c.l.b16 %v75
  %v376 = vunpack.c.l.b16 %v76
  %v377 = vunpack.c.l.b16 %v77
  %v378 = vunpack.c.l.b16 %v78
  %v379 = vunpack.c.l.b16 %v79
  %v380 = vunpack.c.l.b16 %v80
  %v381 = vunpack.c.l.b16 %v81
  %v382 = vunpack.c.l.b16 %v82
  %v383 = vunpack.c.l.b16 %v83
  %v384 = vunpack.c.l.b16 %v84
  %v385 = vunpack.c.l.b16 %v85
  %v386 = vunpack.c.l.b16 %v86
  %v387 = vunpack.c.l.b16 %v87
  %v388 = vunpack.c.l.b16 %v88
  %v389 = vunpack.c.l.b16 %v89
  %v390 = vunpack.c.l.b16 %v90
  %v391 = vunpack.c.l.b16 %v91
  %v392 = vunpack.c.l.b16 %v92
  %v393 = vunpack.c.l.b16 %v93
  %v394 = vunpack.c.l.b16 %v94
  %v395 = vunpack.c.l.b16 %v95
  %v396 = vunpack.c.l.b16 %v96
  %v397 = vunpack.c.l.b16 %v97
  %v398 = vunpack.c.l.b16 %v98
  %v399 = vunpack.c.l.b16 %v99
  %v400 = vunpack.c.l.b16 %v100
  %v401 = vunpack.c.l.b16 %v101
  %v402 = vunpack.c.l.b16 %v102
  %v403 = vunpack.c.l.b16 %v103
  %v404 = vunpack.c.l.b16 %v104
  %v405 = vunpack.c.l.b16 %v105
  %v406 = vunpack.c.l.b16 %v106
  %v407 = vunpack.c.l.b16 %v107
  %v408 = vunpack.c.l.b16 %v108
  %v409 = vunpack.c.l.b16 %v109
  %v410 = vunpack.c.l.b16 %v110
  %v411 = vunpack.c.l.b16 %v111
  %v412 = vunpack.c.l.b16 %v112
  %v413 = vunpack.c.l.b16 %v113
  %v414 = vunpack.c.l.b16 %v114
  %v415 = vunpack.c.l.b16 %v115
  %v416 = vunpack.c.l.b16 %v116
  %v417 = vunpack.c.l.b16 %v117
  %v418 = vunpack.c.l.b16 %v118
  %v419 = vunpack.c.l.b16 %v119
  %v420 = vunpack.c.l.b16 %v120
  %v421 = vunpack.c.l.b16 %v121
  %v422 = vunpack.c.l.b16 %v122
  %v423 = vunpack.c.l.b16 %v123
  %v424 = vunpack.c.l.b16 %v124
  %v425 = vunpack.c.l.b16 %v125
  %v426 = vunpack.c.l.b16 %v126
  %v427 = vunpack.c.l.b16 %v127
  %v428 = vunpack.c.l.b16 %v128
  %v429 = vunpack.c.l.b16 %v129
  %v430 = vunpack.c.l.b16 %v130
  %v431 = vunpack.c.l.b16 %v131
  %v432 = vunpack.c.l.b16 %v132
  %v433 = vunpack.c.l.b16 %v133
  %v434 = vunpack.c.l.b16 %v134
  %v435 = vunpack.c.l.b16 %v135
  %v436 = vunpack.c.l.b16 %v136
  %v437 = vunpack.c.l.b16 %v137
  %v438 = vunpack.c.l.b16 %v138
  %v439 = vunpack.c.l.b16 %v139
  %v440 = vunpack.c.l.b16 %v140
  %v441 = vunpack.c.l.b16 %v141
  %v442 = vunpack.c.l.b16 %v142
  %v443 = vunpack.c.l.b16 %v143
  %v444 = vunpack.c.l.b16 %v144
  %v445 = vunpack.c.l.b16 %v145
  %v446 = vunpack.c.l.b16 %v146
  %v447 = vunpack.c.l.b16 %v147
  %v448 = vunpack.c.l.b16 %v148
  %v449 = vunpack.c.l.b16 %v149
  %v450 = vunpack.c.l.b16 %v150
  %v451 = vunpack.c.l.b16 %v151
  %v452 = vunpack.c.l.b16 %v152
  %v453 = vunpack.c.l.b16 %v153
  %v454 = vunpack.c.l.b16 %v154
  %v455 = vunpack.c.l.b16 %v155
  %v456 = vunpack.c.l.b16 %v156
  %v457 = vunpack.c.l.b16 %v157
  %v458 = vunpack.c.l.b16 %v158
  %v459 = vunpack.c.l.b16 %v159
  %v460 = vunpack.c.l.b16 %v160
  %v461 = vunpack.c.l.b16 %v161
  %v462 = vpack.c.b16 %v336, %v335
  %v463 = vpack.c.b16 %v338, %v337
  %v464 = vpack.c.b16 %v340, %v339
  %v465 = vpack.c.b16 %v342, %v341
  %v466 = vpack.c.b16 %v344, %v343
  %v467 = vpack.c.b16 %v346, %v345
  %v468 = vpack.c.b16 %v348, %v347
  %v469 = vpack.c.b16 %v350, %v349
  %v470 = vpack.c.b16 %v352, %v351
  %v471 = vpack.c.b16 %v354, %v353
  %v472 = vpack.c.b16 %v356, %v355
  %v473 = vpack.c.b16 %v358, %v357
  %v474 = vpack.c.b16 %v360, %v359
  %v475 = vpack.c.b16 %v362, %v361
  %v476 = vpack.c.b16 %v364, %v363
  %v477 = vpack.c.b16 %v366, %v365
  %v478 = vpack.c.b16 %v368, %v367
  %v479 = vpack.c.b16 %v370, %v369
  %v480 = vpack.c.b16 %v372, %v371
  %v481 = vpack.c.b16 %v374, %v373
  %v482 = vpack.c.b16 %v376, %v375
  %v483 = vpack.c.b16 %v378, %v377
  %v484 = vpack.c.b16 %v380, %v379
  %v485 = vpack.c.b16 %v382, %v381
  %v486 = vpack.c.b16 %v384, %v383
  %v487 = vpack.c.b16 %v386, %v385
  %v488 = vpack.c.b16 %v388, %v387
  %v489 = vpack.c.b16 %v390, %v389
  %v490 = vpack.c.b16 %v392, %v391
  %v491 = vpack.c.b16 %v394, %v393
  %v492 = vpack.c.b16 %v396, %v395
  %v493 = vpack.c.b16 %v398, %v397
  %v494 = vpack.c.b16 %v400, %v399
  %v495 = vpack.c.b16 %v402, %v401
  %v496 = vpack.c.b16 %v404, %v403
  %v497 = vpack.c.b16 %v406, %v405
  %v498 = vpack.c.b16 %v408, %v407
  %v499 = vpack.c.b16 %v410, %v409
  %v500 = vpack.c.b16 %v412, %v411
  %v501 = vpack.c.b16 %v414, %v413
  %v502 = vpack.c.b16 %v416, %v415
  %v503 = vpack.c.b16 %v418, %v417
  %v504 = vpack.c.b16 %v420, %v419
  %v505 = vpack.c.b16 %v422, %v421
  %v506 = vpack.c.b16 %v424, %v423
  %v507 = vpack.c.b16 %v426, %v425
  %v508 = vpack.c.b16 %v428, %v427
  %v509 = vpack.c.b16 %v430, %v429
  %v510 = vpack.c.b16 %v432, %v431
  %v511 = vpack.c.b16 %v434, %v433
  %v512 = vpack.c.b16 %v436, %v435
  %v513 = vpack.c.b16 %v438, %v437
  %v514 = vpack.c.b16 %v440, %v439
  %v515 = vpack.c.b16 %v442, %v441
  %v516 = vpack.c.b16 %v444, %v443
  %v517 = vpack.c.b16 %v446, %v445
  %v518 = vpack.c.b16 %v448, %v447
  %v519 = vpack.c.b16 %v450, %v449
  %v520 = vpack.c.b16 %v452, %v451
  %v521 = vpack.c.b16 %v454, %v453
  %v522 = vpack.c.b16 %v456, %v455
  %v523 = vpack.c.b16 %v458, %v457
  %v524 = vpack.c.b16 %v460, %v459
  %v525 = vpack.c.b16 %v461, %v461
  %vm589 = vcmask 965632
  %v591 = vsel %vm589, %v200, 0
  %vm593 = vcmask 1042432
  %v595 = vsel %vm593, %v525, 0
  %597 = vmatprep.subr.bf16.mxu0 0
  %598 = vmatpush1.bf16.msra.mxu0 %v462
  %599 = vmatprep.subr.bf16.mxu0 0
  %600 = vmatpush1.bf16.msra.mxu0 %v463
  %601 = vmatprep.subr.bf16.mxu0 0
  %602 = vmatpush1.bf16.msra.mxu0 %v464
  %603 = vmatprep.subr.bf16.mxu0 0
  %604 = vmatpush1.bf16.msra.mxu0 %v465
  %605 = vmatprep.subr.bf16.mxu0 0
  %606 = vmatpush1.bf16.msra.mxu0 %v466
  %607 = vmatprep.subr.bf16.mxu0 0
  %608 = vmatpush1.bf16.msra.mxu0 %v467
  %609 = vmatprep.subr.bf16.mxu0 0
  %610 = vmatpush1.bf16.msra.mxu0 %v468
  %611 = vmatprep.subr.bf16.mxu0 0
  %612 = vmatpush1.bf16.msra.mxu0 %v469
  %613 = vmatprep.subr.bf16.mxu0 0
  %614 = vmatpush1.bf16.msra.mxu0 %v470
  %615 = vmatprep.subr.bf16.mxu0 0
  %616 = vmatpush1.bf16.msra.mxu0 %v471
  %617 = vmatprep.subr.bf16.mxu0 0
  %618 = vmatpush1.bf16.msra.mxu0 %v472
  %619 = vmatprep.subr.bf16.mxu0 0
  %620 = vmatpush1.bf16.msra.mxu0 %v473
  %621 = vmatprep.subr.bf16.mxu0 0
  %622 = vmatpush1.bf16.msra.mxu0 %v474
  %623 = vmatprep.subr.bf16.mxu0 0
  %624 = vmatpush1.bf16.msra.mxu0 %v475
  %625 = vmatprep.subr.bf16.mxu0 0
  %626 = vmatpush1.bf16.msra.mxu0 %v476
  %627 = vmatprep.subr.bf16.mxu0 0
  %628 = vmatpush1.bf16.msra.mxu0 %v477
  %629 = vmatprep.mubr.bf16.mxu0 %v194
  %630 = vmatmul.mubr.bf16.gmra.mrb[0].mxu0 %v193
  %v631 = vpop.f32.mrb[0].mxu0
  %v632 = vadd.f32 %v167, %v631
  %v633 = vpop.f32.mrb[0].mxu0
  %v634 = vpop.f32.mrb[0].mxu0
  %v635 = vadd.f32 %v167, %v634
  %v636 = vpop.f32.mrb[0].mxu0
  %637 = vdwg.mxu0
  %638 = vmatprep.subr.bf16.mxu0 0
  %639 = vmatpush1.bf16.msra.mxu0 %v478
  %640 = vmatprep.subr.bf16.mxu0 0
  %641 = vmatpush1.bf16.msra.mxu0 %v479
  %642 = vmatprep.subr.bf16.mxu0 0
  %643 = vmatpush1.bf16.msra.mxu0 %v480
  %644 = vmatprep.subr.bf16.mxu0 0
  %645 = vmatpush1.bf16.msra.mxu0 %v481
  %646 = vmatprep.subr.bf16.mxu0 0
  %647 = vmatpush1.bf16.msra.mxu0 %v482
  %648 = vmatprep.subr.bf16.mxu0 0
  %649 = vmatpush1.bf16.msra.mxu0 %v483
  %650 = vmatprep.subr.bf16.mxu0 0
  %651 = vmatpush1.bf16.msra.mxu0 %v484
  %652 = vmatprep.subr.bf16.mxu0 0
  %653 = vmatpush1.bf16.msra.mxu0 %v485
  %654 = vmatprep.subr.bf16.mxu0 0
  %655 = vmatpush1.bf16.msra.mxu0 %v486
  %656 = vmatprep.subr.bf16.mxu0 0
  %657 = vmatpush1.bf16.msra.mxu0 %v487
  %658 = vmatprep.subr.bf16.mxu0 0
  %659 = vmatpush1.bf16.msra.mxu0 %v488
  %660 = vmatprep.subr.bf16.mxu0 0
  %661 = vmatpush1.bf16.msra.mxu0 %v489
  %662 = vmatprep.subr.bf16.mxu0 0
  %663 = vmatpush1.bf16.msra.mxu0 %v490
  %664 = vmatprep.subr.bf16.mxu0 0
  %665 = vmatpush1.bf16.msra.mxu0 %v491
  %666 = vmatprep.subr.bf16.mxu0 0
  %667 = vmatpush1.bf16.msra.mxu0 %v492
  %668 = vmatprep.subr.bf16.mxu0 0
  %669 = vmatpush1.bf16.msra.mxu0 %v493
  %670 = vmatprep.mubr.bf16.mxu0 %v196
  %671 = vmatmul.mubr.bf16.gmra.mrb[0].mxu0 %v195
  %v672 = vpop.f32.mrb[0].mxu0
  %v673 = vadd.f32 %v632, %v672
  %v674 = vpop.f32.mrb[0].mxu0
  %v675 = vpop.f32.mrb[0].mxu0
  %v676 = vadd.f32 %v635, %v675
  %v677 = vpop.f32.mrb[0].mxu0
  %678 = vdwg.mxu0
  %679 = vmatprep.subr.bf16.mxu0 0
  %680 = vmatpush1.bf16.msra.mxu0 %v494
  %681 = vmatprep.subr.bf16.mxu0 0
  %682 = vmatpush1.bf16.msra.mxu0 %v495
  %683 = vmatprep.subr.bf16.mxu0 0
  %684 = vmatpush1.bf16.msra.mxu0 %v496
  %685 = vmatprep.subr.bf16.mxu0 0
  %686 = vmatpush1.bf16.msra.mxu0 %v497
  %687 = vmatprep.subr.bf16.mxu0 0
  %688 = vmatpush1.bf16.msra.mxu0 %v498
  %689 = vmatprep.subr.bf16.mxu0 0
  %690 = vmatpush1.bf16.msra.mxu0 %v499
  %691 = vmatprep.subr.bf16.mxu0 0
  %692 = vmatpush1.bf16.msra.mxu0 %v500
  %693 = vmatprep.subr.bf16.mxu0 0
  %694 = vmatpush1.bf16.msra.mxu0 %v501
  %695 = vmatprep.subr.bf16.mxu0 0
  %696 = vmatpush1.bf16.msra.mxu0 %v502
  %697 = vmatprep.subr.bf16.mxu0 0
  %698 = vmatpush1.bf16.msra.mxu0 %v503
  %699 = vmatprep.subr.bf16.mxu0 0
  %700 = vmatpush1.bf16.msra.mxu0 %v504
  %701 = vmatprep.subr.bf16.mxu0 0
  %702 = vmatpush1.bf16.msra.mxu0 %v505
  %703 = vmatprep.subr.bf16.mxu0 0
  %704 = vmatpush1.bf16.msra.mxu0 %v506
  %705 = vmatprep.subr.bf16.mxu0 0
  %706 = vmatpush1.bf16.msra.mxu0 %v507
  %707 = vmatprep.subr.bf16.mxu0 0
  %708 = vmatpush1.bf16.msra.mxu0 %v508
  %709 = vmatprep.subr.bf16.mxu0 0
  %710 = vmatpush1.bf16.msra.mxu0 %v509
  %711 = vmatprep.mubr.bf16.mxu0 %v198
  %712 = vmatmul.mubr.bf16.gmra.mrb[0].mxu0 %v197
  %v713 = vpop.f32.mrb[0].mxu0
  %v714 = vadd.f32 %v673, %v713
  %v715 = vpop.f32.mrb[0].mxu0
  %v716 = vpop.f32.mrb[0].mxu0
  %v717 = vadd.f32 %v676, %v716
  %v718 = vpop.f32.mrb[0].mxu0
  %719 = vdwg.mxu0
  %720 = vmatprep.subr.bf16.mxu0 0
  %721 = vmatpush1.bf16.msra.mxu0 %v510
  %722 = vmatprep.subr.bf16.mxu0 0
  %723 = vmatpush1.bf16.msra.mxu0 %v511
  %724 = vmatprep.subr.bf16.mxu0 0
  %725 = vmatpush1.bf16.msra.mxu0 %v512
  %726 = vmatprep.subr.bf16.mxu0 0
  %727 = vmatpush1.bf16.msra.mxu0 %v513
  %728 = vmatprep.subr.bf16.mxu0 0
  %729 = vmatpush1.bf16.msra.mxu0 %v514
  %730 = vmatprep.subr.bf16.mxu0 0
  %731 = vmatpush1.bf16.msra.mxu0 %v515
  %732 = vmatprep.subr.bf16.mxu0 0
  %733 = vmatpush1.bf16.msra.mxu0 %v516
  %734 = vmatprep.subr.bf16.mxu0 0
  %735 = vmatpush1.bf16.msra.mxu0 %v517
  %736 = vmatprep.subr.bf16.mxu0 0
  %737 = vmatpush1.bf16.msra.mxu0 %v518
  %738 = vmatprep.subr.bf16.mxu0 0
  %739 = vmatpush1.bf16.msra.mxu0 %v519
  %740 = vmatprep.subr.bf16.mxu0 0
  %741 = vmatpush1.bf16.msra.mxu0 %v520
  %742 = vmatprep.subr.bf16.mxu0 0
  %743 = vmatpush1.bf16.msra.mxu0 %v521
  %744 = vmatprep.subr.bf16.mxu0 0
  %745 = vmatpush1.bf16.msra.mxu0 %v522
  %746 = vmatprep.subr.bf16.mxu0 0
  %747 = vmatpush1.bf16.msra.mxu0 %v523
  %748 = vmatprep.subr.bf16.mxu0 0
  %749 = vmatpush1.bf16.msra.mxu0 %v524
  %750 = vmatprep.subr.bf16.mxu0 0
  %751 = vmatpush1.bf16.msra.mxu0 %v595
  %752 = vmatprep.mubr.bf16.mxu0 %v591
  %753 = vmatmul.mubr.bf16.gmra.mrb[0].mxu0 %v199
  %v754 = vpop.f32.mrb[0].mxu0
  %v755 = vadd.f32 %v714, %v754
  %v756 = vpop.f32.mrb[0].mxu0
  %v757 = vpop.f32.mrb[0].mxu0
  %v758 = vadd.f32 %v717, %v757
  %v759 = vpop.f32.mrb[0].mxu0
  %760 = vdwg.mxu0
  %vm761 = vcmp.gt.f32.partialorder %v755, 0.0
  %vm762 = vcmp.gt.f32.partialorder %v758, 0.0
  %v763 = vmul.f32 %v755, 0.01
  %v764 = vmul.f32 %v758, 0.01
  %v765 = vsel %vm761, %v755, %v763
  %v766 = vsel %vm762, %v758, %v764
  %v767 = vld [vmem:[%s3] sm:$0xff]
  %v768 = vld [vmem:[%s3 + $0x8] sm:$0xff]
  %v769 = vld [vmem:[%s3 + $0x10] sm:$0xff]
  %v770 = vld [vmem:[%s3 + $0x18] sm:$0xff]
  %v771 = vld [vmem:[%s4] sm:$0x1]
  %v773 = vlaneseq
  %v774 = vshrl.u32 %v773, 7
  %v775 = vsub.s32 0, %v774
  %v776 = vrot.slane %v771, %v775
  %vm778 = vcmask 261120
  %v780 = vsel %vm778, %v765, 0
  %v783 = vsel %vm778, %v766, 0
  %785 = vmatprep.subr.mxu0 0.0
  %786 = vmatpush1.msra.mxu0 %v767
  %787 = vmatprep.subr.mxu0 0.0
  %788 = vmatpush1.msra.mxu0 %v768
  %789 = vmatprep.subr.mxu0 0.0
  %790 = vmatpush1.msra.mxu0 %v769
  %791 = vmatprep.subr.mxu0 0.0
  %792 = vmatpush1.msra.mxu0 %v770
  %793 = vmatprep.subr.mxu0 0.0
  %794 = vmatpush1.msra.mxu0 0.0
  %795 = vmatprep.subr.mxu0 0.0
  %796 = vmatpush1.msra.mxu0 0.0
  %797 = vmatprep.subr.mxu0 0.0
  %798 = vmatpush1.msra.mxu0 0.0
  %799 = vmatprep.subr.mxu0 0.0
  %800 = vmatpush1.msra.mxu0 0.0
  %801 = vmatprep.subr.mxu0 0.0
  %802 = vmatpush1.msra.mxu0 0.0
  %803 = vmatprep.subr.mxu0 0.0
  %804 = vmatpush1.msra.mxu0 0.0
  %805 = vmatprep.subr.mxu0 0.0
  %806 = vmatpush1.msra.mxu0 0.0
  %807 = vmatprep.subr.mxu0 0.0
  %808 = vmatpush1.msra.mxu0 0.0
  %809 = vmatprep.subr.mxu0 0.0
  %810 = vmatpush1.msra.mxu0 0.0
  %811 = vmatprep.subr.mxu0 0.0
  %812 = vmatpush1.msra.mxu0 0.0
  %813 = vmatprep.subr.mxu0 0.0
  %814 = vmatpush1.msra.mxu0 0.0
  %815 = vmatprep.subr.mxu0 0.0
  %816 = vmatpush1.msra.mxu0 0.0
  %817 = vmatprep.subr.mxu0 0.0
  %818 = vmatpush1.msra.mxu0 0.0
  %819 = vmatprep.subr.mxu0 0.0
  %820 = vmatpush1.msra.mxu0 0.0
  %821 = vmatprep.subr.mxu0 0.0
  %822 = vmatpush1.msra.mxu0 0.0
  %823 = vmatprep.subr.mxu0 0.0
  %824 = vmatpush1.msra.mxu0 0.0
  %825 = vmatprep.subr.mxu0 0.0
  %826 = vmatpush1.msra.mxu0 0.0
  %827 = vmatprep.subr.mxu0 0.0
  %828 = vmatpush1.msra.mxu0 0.0
  %829 = vmatprep.subr.mxu0 0.0
  %830 = vmatpush1.msra.mxu0 0.0
  %831 = vmatprep.subr.mxu0 0.0
  %832 = vmatpush1.msra.mxu0 0.0
  %833 = vmatprep.subr.mxu0 0.0
  %834 = vmatpush1.msra.mxu0 0.0
  %835 = vmatprep.subr.mxu0 0.0
  %836 = vmatpush1.msra.mxu0 0.0
  %837 = vmatprep.subr.mxu0 0.0
  %838 = vmatpush1.msra.mxu0 0.0
  %839 = vmatprep.subr.mxu0 0.0
  %840 = vmatpush1.msra.mxu0 0.0
  %841 = vmatprep.subr.mxu0 0.0
  %842 = vmatpush1.msra.mxu0 0.0
  %843 = vmatprep.subr.mxu0 0.0
  %844 = vmatpush1.msra.mxu0 0.0
  %845 = vmatprep.subr.mxu0 0.0
  %846 = vmatpush1.msra.mxu0 0.0
  %847 = vmatprep.subr.mxu0 0.0
  %848 = vmatpush1.msra.mxu0 0.0
  %849 = vmatprep.mubr.f32.mxu0 0.0
  %850 = vmatmul.mubr.f32.gmra.mrb[0].mxu0 %v780
  %v851 = vpop.f32.mrb[0].mxu0
  %v852 = vadd.f32 %v776, %v851
  %v853 = vpop.f32.mrb[0].mxu0
  %854 = vmatprep.mubr.f32.mxu0 0.0
  %855 = vmatmul.mubr.f32.gmra.mrb[0].mxu0 %v783
  %v856 = vpop.f32.mrb[0].mxu0
  %v857 = vadd.f32 %v776, %v856
  %v858 = vpop.f32.mrb[0].mxu0
  %859 = vdwg.mxu0
  %vm860 = vcmp.gt.f32.partialorder %v852, 0.0
  %vm861 = vcmp.gt.f32.partialorder %v857, 0.0
  %v862 = vmul.f32 %v852, 0.01
  %v863 = vmul.f32 %v857, 0.01
  %v864 = vsel %vm860, %v852, %v862
  %v865 = vsel %vm861, %v857, %v863
  %v866 = vld [vmem:[%s5] sm:$0xff]
  %v867 = vld [vmem:[%s5 + $0x8] sm:$0xff]
  %v868 = vld [vmem:[%s5 + $0x10] sm:$0xff]
  %v869 = vld [vmem:[%s5 + $0x18] sm:$0xff]
  %v870 = vld [vmem:[%s6] sm:$0x1]
  %v872 = vlaneseq
  %v873 = vshrl.u32 %v872, 7
  %v874 = vsub.s32 0, %v873
  %v875 = vrot.slane %v870, %v874
  %v878 = vsel %vm778, %v864, 0
  %v881 = vsel %vm778, %v865, 0
  %883 = vmatprep.subr.mxu0 0.0
  %884 = vmatpush1.msra.mxu0 %v866
  %885 = vmatprep.subr.mxu0 0.0
  %886 = vmatpush1.msra.mxu0 %v867
  %887 = vmatprep.subr.mxu0 0.0
  %888 = vmatpush1.msra.mxu0 %v868
  %889 = vmatprep.subr.mxu0 0.0
  %890 = vmatpush1.msra.mxu0 %v869
  %891 = vmatprep.subr.mxu0 0.0
  %892 = vmatpush1.msra.mxu0 0.0
  %893 = vmatprep.subr.mxu0 0.0
  %894 = vmatpush1.msra.mxu0 0.0
  %895 = vmatprep.subr.mxu0 0.0
  %896 = vmatpush1.msra.mxu0 0.0
  %897 = vmatprep.subr.mxu0 0.0
  %898 = vmatpush1.msra.mxu0 0.0
  %899 = vmatprep.subr.mxu0 0.0
  %900 = vmatpush1.msra.mxu0 0.0
  %901 = vmatprep.subr.mxu0 0.0
  %902 = vmatpush1.msra.mxu0 0.0
  %903 = vmatprep.subr.mxu0 0.0
  %904 = vmatpush1.msra.mxu0 0.0
  %905 = vmatprep.subr.mxu0 0.0
  %906 = vmatpush1.msra.mxu0 0.0
  %907 = vmatprep.subr.mxu0 0.0
  %908 = vmatpush1.msra.mxu0 0.0
  %909 = vmatprep.subr.mxu0 0.0
  %910 = vmatpush1.msra.mxu0 0.0
  %911 = vmatprep.subr.mxu0 0.0
  %912 = vmatpush1.msra.mxu0 0.0
  %913 = vmatprep.subr.mxu0 0.0
  %914 = vmatpush1.msra.mxu0 0.0
  %915 = vmatprep.subr.mxu0 0.0
  %916 = vmatpush1.msra.mxu0 0.0
  %917 = vmatprep.subr.mxu0 0.0
  %918 = vmatpush1.msra.mxu0 0.0
  %919 = vmatprep.subr.mxu0 0.0
  %920 = vmatpush1.msra.mxu0 0.0
  %921 = vmatprep.subr.mxu0 0.0
  %922 = vmatpush1.msra.mxu0 0.0
  %923 = vmatprep.subr.mxu0 0.0
  %924 = vmatpush1.msra.mxu0 0.0
  %925 = vmatprep.subr.mxu0 0.0
  %926 = vmatpush1.msra.mxu0 0.0
  %927 = vmatprep.subr.mxu0 0.0
  %928 = vmatpush1.msra.mxu0 0.0
  %929 = vmatprep.subr.mxu0 0.0
  %930 = vmatpush1.msra.mxu0 0.0
  %931 = vmatprep.subr.mxu0 0.0
  %932 = vmatpush1.msra.mxu0 0.0
  %933 = vmatprep.subr.mxu0 0.0
  %934 = vmatpush1.msra.mxu0 0.0
  %935 = vmatprep.subr.mxu0 0.0
  %936 = vmatpush1.msra.mxu0 0.0
  %937 = vmatprep.subr.mxu0 0.0
  %938 = vmatpush1.msra.mxu0 0.0
  %939 = vmatprep.subr.mxu0 0.0
  %940 = vmatpush1.msra.mxu0 0.0
  %941 = vmatprep.subr.mxu0 0.0
  %942 = vmatpush1.msra.mxu0 0.0
  %943 = vmatprep.subr.mxu0 0.0
  %944 = vmatpush1.msra.mxu0 0.0
  %945 = vmatprep.subr.mxu0 0.0
  %946 = vmatpush1.msra.mxu0 0.0
  %947 = vmatprep.mubr.f32.mxu0 0.0
  %948 = vmatmul.mubr.f32.gmra.mrb[0].mxu0 %v878
  %v949 = vpop.f32.mrb[0].mxu0
  %v950 = vadd.f32 %v875, %v949
  %v951 = vpop.f32.mrb[0].mxu0
  %952 = vmatprep.mubr.f32.mxu0 0.0
  %953 = vmatmul.mubr.f32.gmra.mrb[0].mxu0 %v881
  %v954 = vpop.f32.mrb[0].mxu0
  %v955 = vadd.f32 %v875, %v954
  %v956 = vpop.f32.mrb[0].mxu0
  %957 = vdwg.mxu0
  %v958 = vpack.c.bf16 %v955, %v950
  %v960 = vunpack.c.l.b16 %v958
  %v961 = vunpack.c.h.b16 %v958
  %v962 = vpack.c.b16 %v960, %v960
  %v963 = vpack.c.b16 %v961, %v961
  %966 = vst [vmem:[%s7] sm:$0xf] %v962
  %967 = vst [vmem:[%s7 + $0x4] sm:$0xf] %v963
  // Predicated region
  $region30: #{_lambda_.1} parent=0 // pred_check
    _
  $region31: #{_lambda_.1} parent=0 // pred_check_branch
    %969 = sbr.rel (0) target = $region33
  $region32: #{_lambda_.1} parent=0 // pred_region
    _
  $region33: #{_lambda_.1} parent=0 // pred_fallthru
    _
  // Predicated region
  $region34: #{_lambda_.1} parent=0 // pred_check
    _
  $region35: #{_lambda_.1} parent=0 // pred_check_branch
    %971 = sbr.rel (0) target = $region37
  $region36: #{_lambda_.1} parent=0 // pred_region
    _
  $region37: #{_lambda_.1} parent=0 // pred_fallthru
    _

</llo_original>
